<compile_context>
chip_gen: v5e
topology: v5e:2x2
jax: 0.10.0
libtpu: 0.0.40
codegen_flags: <defaults>
</compile_context>

<pallas_src>
import functools

import jax
import jax.numpy as jnp
from jax.experimental import pallas as pl
from jax.experimental.pallas import tpu as pltpu

Z_DIM = 100
Z_PAD = 128          # lane-aligned z / K dim for the first matmul
HIDDEN = 128
OUT_DIM = 28 * 28    # 784


def _generator_kernel(z_ref,
                      w1_ref, b1_ref,
                      w2_ref, b2_ref,
                      w3_ref, b3_ref,
                      w4_ref, b4_ref,
                      out_ref,
                      *, tanh_dtype):
    """One batch tile of the fused 4-layer MLP: (Linear+ReLU)x3 -> Linear -> Tanh.

    bf16 matmul inputs -> MXU with f32 accumulation; ReLU/bias in f32 on the
    VPU; tanh on the EUP (bf16 on v6e/v7x, f32 on v5e); bf16 store.
    """
    h = jnp.dot(z_ref[...], w1_ref[...],
                preferred_element_type=jnp.float32) + b1_ref[...]
    h = jnp.maximum(h, 0.0)

    h = jnp.dot(h.astype(jnp.bfloat16), w2_ref[...],
                preferred_element_type=jnp.float32) + b2_ref[...]
    h = jnp.maximum(h, 0.0)

    h = jnp.dot(h.astype(jnp.bfloat16), w3_ref[...],
                preferred_element_type=jnp.float32) + b3_ref[...]
    h = jnp.maximum(h, 0.0)

    h = jnp.dot(h.astype(jnp.bfloat16), w4_ref[...],
                preferred_element_type=jnp.float32) + b4_ref[...]
    out_ref[...] = jnp.tanh(h.astype(tanh_dtype)).astype(out_ref.dtype)


def _const_spec(shape):
    # Whole array, same block at every grid step -> fetched once, VMEM-resident.
    return pl.BlockSpec(shape, lambda i: tuple(0 for _ in shape))


def _round_up(x, m):
    return ((x + m - 1) // m) * m


def _supports_bf16_eup():
    """True on chips with a bf16 VPU/EUP path (v6e/v7x); False on v5e & older."""
    try:
        kind = jax.devices()[0].device_kind.lower()
    except Exception:
        return False
    for old in ("v2", "v3", "v4", "v5"):
        if old in kind:
            return False
    return True


def generator_forward(z, params, *, block_batch=1024, out_dtype=jnp.float32):
    """z: (B, Z_DIM) float32 -> img: (B, 1, 28, 28) in `out_dtype` (NCHW)."""
    B = z.shape[0]
    (w1, b1), (w2, b2), (w3, b3), (w4, b4) = params

    # Batch tile: 512-2048 reaches ~85% of the measured HBM roofline.  Clamp so
    # the grid has >= 2 steps when B allows it (both v7x TensorCores busy) and
    # keep it a multiple of 16 (bf16 sublane pack).
    tb_cap = max(16, _round_up(pl.cdiv(B, 2), 16))
    tb = min(block_batch, tb_cap)
    n_tiles = pl.cdiv(B, tb)
    b_pad = n_tiles * tb

    # Pad batch rows (computed on zeros, sliced off below) and lane-align the
    # z feature dim 100 -> 128; the extra z columns are zero and the extra w1
    # rows are zero, so layer-1 output is unchanged.
    z = jnp.pad(z, ((0, b_pad - B), (0, Z_PAD - z.shape[1])))
    z_bf16 = z.astype(jnp.bfloat16)  # halve z DMA; MXU input dtype
    if w1.shape[0] != Z_PAD:
        w1 = jnp.pad(w1, ((0, Z_PAD - w1.shape[0]), (0, 0)))

    kernel = functools.partial(
        _generator_kernel,
        tanh_dtype=jnp.bfloat16 if _supports_bf16_eup() else jnp.float32)

    flat = pl.pallas_call(
        kernel,
        # bf16 output: the kernel is writeback-bound, this halves HBM traffic.
        out_shape=jax.ShapeDtypeStruct((b_pad, OUT_DIM), jnp.bfloat16),
        grid=(n_tiles,),
        in_specs=[
            pl.BlockSpec((tb, Z_PAD), lambda i: (i, 0)),
            _const_spec(w1.shape), _const_spec(b1.shape),
            _const_spec(w2.shape), _const_spec(b2.shape),
            _const_spec(w3.shape), _const_spec(b3.shape),
            _const_spec(w4.shape), _const_spec(b4.shape),
        ],
        out_specs=pl.BlockSpec((tb, OUT_DIM), lambda i: (i, 0)),
        compiler_params=pltpu.CompilerParams(
            # Batch tiles are independent -> shard across v7x's 2 TensorCores.
            dimension_semantics=("parallel",),
            # Weights ~0.3 MiB + double-buffered (tb,128) bf16 z and
            # (tb,784) bf16 out tiles + f32 intermediates: < 10 MiB at tb=1024.
            # 32 MiB keeps headroom on every generation (v5e default is 16 MiB).
            vmem_limit_bytes=32 << 20,
        ),
    )(z_bf16, w1, b1, w2, b2, w3, b3, w4, b4)

    if b_pad != B:
        flat = flat[:B]
    # Glue: match PyTorch's img.view(-1, 1, 28, 28) (NCHW); zero-copy reshape.
    # Keep bf16 by passing out_dtype=jnp.bfloat16 to avoid the upcast pass.
    return flat.reshape(B, 1, 28, 28).astype(out_dtype)


def init_params(key):
    """Matches PyTorch nn.Linear default init: U(-1/sqrt(fan_in), 1/sqrt(fan_in)).

    Weights stored (in_features, out_features) in bf16 (MXU input dtype);
    biases kept in f32 with shape (1, fan_out)."""
    dims = [(Z_DIM, HIDDEN), (HIDDEN, HIDDEN), (HIDDEN, HIDDEN), (HIDDEN, OUT_DIM)]
    params = []
    for (fan_in, fan_out) in dims:
        key, kw, kb = jax.random.split(key, 3)
        bound = 1.0 / jnp.sqrt(jnp.float32(fan_in))
        w = jax.random.uniform(kw, (fan_in, fan_out), jnp.float32, -bound, bound)
        b = jax.random.uniform(kb, (1, fan_out), jnp.float32, -bound, bound)
        params.append((w.astype(jnp.bfloat16), b))
    return params


def generator_reference(z, params):
    """Pure-JAX reference using the same bf16-in / f32-accumulate / bf16-out recipe."""
    h = z.astype(jnp.bfloat16)
    for i, (w, b) in enumerate(params):
        h = jnp.dot(h, w, preferred_element_type=jnp.float32) + b
        if i < 3:
            h = jnp.maximum(h, 0.0).astype(jnp.bfloat16)
        else:
            h = jnp.tanh(h).astype(jnp.bfloat16).astype(jnp.float32)
    return h.reshape(-1, 1, 28, 28)


if __name__ == "__main__":
    key = jax.random.PRNGKey(0)
    kp, kz = jax.random.split(key)

    params = init_params(kp)
    B = 8
    z = jax.random.normal(kz, (B, Z_DIM), dtype=jnp.float32)

    img = generator_forward(z, params)
    img = jax.block_until_ready(img)

    ref = generator_reference(z, params)
    assert img.shape == (B, 1, 28, 28), img.shape
    max_err = float(jnp.max(jnp.abs(img - ref)))
    # bf16 output quantization (+ optional bf16 tanh on v6e/v7x) bounds the
    # disagreement vs the bf16-rounded reference to a couple of bf16 ulps.
    assert jnp.allclose(img, ref, atol=2e-2, rtol=2e-2), f"mismatch, max_err={max_err}"

    print("KERNEL_OK")
</pallas_src>

<mosaic_0001>
module attributes {stable_mosaic.version = 11 : i64} {
  func.func @_generator_kernel(%arg0: i32, %arg1: memref<16x128xbf16, #tpu.memory_space<vmem>>, %arg2: memref<128x128xbf16, #tpu.memory_space<vmem>>, %arg3: memref<1x128xf32, #tpu.memory_space<vmem>>, %arg4: memref<128x128xbf16, #tpu.memory_space<vmem>>, %arg5: memref<1x128xf32, #tpu.memory_space<vmem>>, %arg6: memref<128x128xbf16, #tpu.memory_space<vmem>>, %arg7: memref<1x128xf32, #tpu.memory_space<vmem>>, %arg8: memref<128x784xbf16, #tpu.memory_space<vmem>>, %arg9: memref<1x784xf32, #tpu.memory_space<vmem>>, %arg10: memref<16x784xbf16, #tpu.memory_space<vmem>>) attributes {dimension_semantics = [#tpu.dimension_semantics<parallel>], iteration_bounds = array<i64: 1>, scalar_prefetch = 0 : i64, scratch_operands = 0 : i64, tpu.core_type = #tpu.core_type<tc>, window_params = [{transform_indices = @transform_0, window_bounds = array<i64: 16, 128>}, {pipeline_mode = #tpu.pipeline_mode<synchronous>, transform_indices = @transform_1, window_bounds = array<i64: 128, 128>}, {pipeline_mode = #tpu.pipeline_mode<synchronous>, transform_indices = @transform_2, window_bounds = array<i64: 1, 128>}, {pipeline_mode = #tpu.pipeline_mode<synchronous>, transform_indices = @transform_3, window_bounds = array<i64: 128, 128>}, {pipeline_mode = #tpu.pipeline_mode<synchronous>, transform_indices = @transform_4, window_bounds = array<i64: 1, 128>}, {pipeline_mode = #tpu.pipeline_mode<synchronous>, transform_indices = @transform_5, window_bounds = array<i64: 128, 128>}, {pipeline_mode = #tpu.pipeline_mode<synchronous>, transform_indices = @transform_6, window_bounds = array<i64: 1, 128>}, {pipeline_mode = #tpu.pipeline_mode<synchronous>, transform_indices = @transform_7, window_bounds = array<i64: 128, 784>}, {pipeline_mode = #tpu.pipeline_mode<synchronous>, transform_indices = @transform_8, window_bounds = array<i64: 1, 784>}, {transform_indices = @transform_9, window_bounds = array<i64: 16, 784>}]} {
    %c0 = arith.constant 0 : index
    %c0_0 = arith.constant 0 : index
    %0 = vector.load %arg1[%c0, %c0_0] : memref<16x128xbf16, #tpu.memory_space<vmem>>, vector<16x128xbf16>
    %c0_1 = arith.constant 0 : index
    %c0_2 = arith.constant 0 : index
    %1 = vector.load %arg2[%c0_1, %c0_2] : memref<128x128xbf16, #tpu.memory_space<vmem>>, vector<128x128xbf16>
    %cst = arith.constant dense<0.000000e+00> : vector<16x128xf32>
    %2 = tpu.matmul %0, %1, %cst {dimension_numbers = #tpu.dot_dimension_numbers<[1], [0], [0], [1], [0, 0, 1, 1], [], []>} : vector<16x128xbf16>, vector<128x128xbf16>, vector<16x128xf32> -> vector<16x128xf32>
    %c0_3 = arith.constant 0 : index
    %c0_4 = arith.constant 0 : index
    %3 = vector.load %arg3[%c0_3, %c0_4] : memref<1x128xf32, #tpu.memory_space<vmem>>, vector<1x128xf32>
    %4 = vector.broadcast %3 : vector<1x128xf32> to vector<16x128xf32>
    %5 = arith.addf %2, %4 : vector<16x128xf32>
    %cst_5 = arith.constant 0.000000e+00 : f32
    %6 = vector.broadcast %cst_5 : f32 to vector<16x128xf32>
    %7 = arith.maximumf %5, %6 : vector<16x128xf32>
    %8 = arith.truncf %7 : vector<16x128xf32> to vector<16x128xbf16>
    %c0_6 = arith.constant 0 : index
    %c0_7 = arith.constant 0 : index
    %9 = vector.load %arg4[%c0_6, %c0_7] : memref<128x128xbf16, #tpu.memory_space<vmem>>, vector<128x128xbf16>
    %cst_8 = arith.constant dense<0.000000e+00> : vector<16x128xf32>
    %10 = tpu.matmul %8, %9, %cst_8 {dimension_numbers = #tpu.dot_dimension_numbers<[1], [0], [0], [1], [0, 0, 1, 1], [], []>} : vector<16x128xbf16>, vector<128x128xbf16>, vector<16x128xf32> -> vector<16x128xf32>
    %c0_9 = arith.constant 0 : index
    %c0_10 = arith.constant 0 : index
    %11 = vector.load %arg5[%c0_9, %c0_10] : memref<1x128xf32, #tpu.memory_space<vmem>>, vector<1x128xf32>
    %12 = vector.broadcast %11 : vector<1x128xf32> to vector<16x128xf32>
    %13 = arith.addf %10, %12 : vector<16x128xf32>
    %cst_11 = arith.constant 0.000000e+00 : f32
    %14 = vector.broadcast %cst_11 : f32 to vector<16x128xf32>
    %15 = arith.maximumf %13, %14 : vector<16x128xf32>
    %16 = arith.truncf %15 : vector<16x128xf32> to vector<16x128xbf16>
    %c0_12 = arith.constant 0 : index
    %c0_13 = arith.constant 0 : index
    %17 = vector.load %arg6[%c0_12, %c0_13] : memref<128x128xbf16, #tpu.memory_space<vmem>>, vector<128x128xbf16>
    %cst_14 = arith.constant dense<0.000000e+00> : vector<16x128xf32>
    %18 = tpu.matmul %16, %17, %cst_14 {dimension_numbers = #tpu.dot_dimension_numbers<[1], [0], [0], [1], [0, 0, 1, 1], [], []>} : vector<16x128xbf16>, vector<128x128xbf16>, vector<16x128xf32> -> vector<16x128xf32>
    %c0_15 = arith.constant 0 : index
    %c0_16 = arith.constant 0 : index
    %19 = vector.load %arg7[%c0_15, %c0_16] : memref<1x128xf32, #tpu.memory_space<vmem>>, vector<1x128xf32>
    %20 = vector.broadcast %19 : vector<1x128xf32> to vector<16x128xf32>
    %21 = arith.addf %18, %20 : vector<16x128xf32>
    %cst_17 = arith.constant 0.000000e+00 : f32
    %22 = vector.broadcast %cst_17 : f32 to vector<16x128xf32>
    %23 = arith.maximumf %21, %22 : vector<16x128xf32>
    %24 = arith.truncf %23 : vector<16x128xf32> to vector<16x128xbf16>
    %c0_18 = arith.constant 0 : index
    %c0_19 = arith.constant 0 : index
    %25 = vector.load %arg8[%c0_18, %c0_19] : memref<128x784xbf16, #tpu.memory_space<vmem>>, vector<128x784xbf16>
    %cst_20 = arith.constant dense<0.000000e+00> : vector<16x784xf32>
    %26 = tpu.matmul %24, %25, %cst_20 {dimension_numbers = #tpu.dot_dimension_numbers<[1], [0], [0], [1], [0, 0, 1, 1], [], []>} : vector<16x128xbf16>, vector<128x784xbf16>, vector<16x784xf32> -> vector<16x784xf32>
    %c0_21 = arith.constant 0 : index
    %c0_22 = arith.constant 0 : index
    %27 = vector.load %arg9[%c0_21, %c0_22] : memref<1x784xf32, #tpu.memory_space<vmem>>, vector<1x784xf32>
    %28 = vector.broadcast %27 : vector<1x784xf32> to vector<16x784xf32>
    %29 = arith.addf %26, %28 : vector<16x784xf32>
    %30 = arith.truncf %29 : vector<16x784xf32> to vector<16x784xbf16>
    %31 = math.tanh %30 : vector<16x784xbf16>
    %c0_23 = arith.constant 0 : index
    %c0_24 = arith.constant 0 : index
    %32 = vector.load %arg10[%c0_23, %c0_24] : memref<16x784xbf16, #tpu.memory_space<vmem>>, vector<16x784xbf16>
    tpu.vector_store %arg10[%c0_23, %c0_24], %31 {strides = array<i32>} : memref<16x784xbf16, #tpu.memory_space<vmem>>, vector<16x784xbf16>,
    return
  }
  func.func @transform_0(%arg0: i32) -> (i32, i32) {
    %c0_i32 = arith.constant 0 : i32
    %c0_i32_0 = arith.constant 0 : i32
    return %arg0, %c0_i32 : i32, i32
  }
  func.func @transform_1(%arg0: i32) -> (i32, i32) {
    %c0_i32 = arith.constant 0 : i32
    %c0_i32_0 = arith.constant 0 : i32
    %c0_i32_1 = arith.constant 0 : i32
    return %c0_i32, %c0_i32_0 : i32, i32
  }
  func.func @transform_2(%arg0: i32) -> (i32, i32) {
    %c0_i32 = arith.constant 0 : i32
    %c0_i32_0 = arith.constant 0 : i32
    %c0_i32_1 = arith.constant 0 : i32
    return %c0_i32, %c0_i32_0 : i32, i32
  }
  func.func @transform_3(%arg0: i32) -> (i32, i32) {
    %c0_i32 = arith.constant 0 : i32
    %c0_i32_0 = arith.constant 0 : i32
    %c0_i32_1 = arith.constant 0 : i32
    return %c0_i32, %c0_i32_0 : i32, i32
  }
  func.func @transform_4(%arg0: i32) -> (i32, i32) {
    %c0_i32 = arith.constant 0 : i32
    %c0_i32_0 = arith.constant 0 : i32
    %c0_i32_1 = arith.constant 0 : i32
    return %c0_i32, %c0_i32_0 : i32, i32
  }
  func.func @transform_5(%arg0: i32) -> (i32, i32) {
    %c0_i32 = arith.constant 0 : i32
    %c0_i32_0 = arith.constant 0 : i32
    %c0_i32_1 = arith.constant 0 : i32
    return %c0_i32, %c0_i32_0 : i32, i32
  }
  func.func @transform_6(%arg0: i32) -> (i32, i32) {
    %c0_i32 = arith.constant 0 : i32
    %c0_i32_0 = arith.constant 0 : i32
    %c0_i32_1 = arith.constant 0 : i32
    return %c0_i32, %c0_i32_0 : i32, i32
  }
  func.func @transform_7(%arg0: i32) -> (i32, i32) {
    %c0_i32 = arith.constant 0 : i32
    %c0_i32_0 = arith.constant 0 : i32
    %c0_i32_1 = arith.constant 0 : i32
    return %c0_i32, %c0_i32_0 : i32, i32
  }
  func.func @transform_8(%arg0: i32) -> (i32, i32) {
    %c0_i32 = arith.constant 0 : i32
    %c0_i32_0 = arith.constant 0 : i32
    %c0_i32_1 = arith.constant 0 : i32
    return %c0_i32, %c0_i32_0 : i32, i32
  }
  func.func @transform_9(%arg0: i32) -> (i32, i32) {
    %c0_i32 = arith.constant 0 : i32
    %c0_i32_0 = arith.constant 0 : i32
    return %arg0, %c0_i32 : i32, i32
  }
}

</mosaic_0001>

<llo_original>
// kernel: tpu_custom_call.1
$region0: #{tpu_custom_call.1}
  #allocation0 [shape = 'u32[]', space=smem, size = 0x4, offset = 0x4, fixed_abs, tag = 'smem constant byte address 0x4 - core index']
  #allocation1 [shape = 'u32[72,128]{1,0:T(1,128)}', space=vmem, size = 0x9000, scoped, tag = 'internal scratch']
  %s0 = inlined_call_operand.vmem [shape: bf16[16,128], index: 0, kind: input, shape index: {}]
  %s1 = inlined_call_operand.vmem [shape: bf16[128,128], index: 1, kind: input, shape index: {}]
  %s2 = inlined_call_operand.vmem [shape: f32[1,128], index: 2, kind: input, shape index: {}]
  %s3 = inlined_call_operand.vmem [shape: bf16[128,128], index: 3, kind: input, shape index: {}]
  %s4 = inlined_call_operand.vmem [shape: f32[1,128], index: 4, kind: input, shape index: {}]
  %s5 = inlined_call_operand.vmem [shape: bf16[128,128], index: 5, kind: input, shape index: {}]
  %s6 = inlined_call_operand.vmem [shape: f32[1,128], index: 6, kind: input, shape index: {}]
  %s7 = inlined_call_operand.vmem [shape: bf16[128,784], index: 7, kind: input, shape index: {}]
  %s8 = inlined_call_operand.vmem [shape: f32[1,784], index: 8, kind: input, shape index: {}]
  %s9 = inlined_call_operand.hbm [shape: bf16[16,784], index: 9, kind: output, shape index: {}]
  %s10 = sld [smem:[#allocation0]]
  $region46: #{tpu_custom_call.1} parent=0
    _
  %s12 = ssub.s32 1, %s10
  %s13 = scalar_select 0, %s12, %s10
  $region1: #{tpu_custom_call.1} parent=0
    #allocation2 [shape = 'u8[28672]{0}', space=vmem, size = 0x7000, scoped, tag = 'output window, operand 0, single buffered']
    #allocation3 [shape = 's32[1]{0}', space=sflag, size = 0x4, scoped, tag = 'scoped memory for tpu_custom_call.1']
    %14 = vsyncpa [#allocation3], 0
    // Predicated region
    $region2: #{tpu_custom_call.1} parent=1 // pred_check
      _
    $region3: #{tpu_custom_call.1} parent=1 // pred_check_branch
      %16 = sbr.rel (0) target = $region5
    $region4: #{tpu_custom_call.1} parent=1 // pred_region
      _
    $region5: #{tpu_custom_call.1} parent=1 // pred_fallthru
      _
    // Predicated region
    $region6: #{tpu_custom_call.1} parent=1 // pred_check
      _
    $region7: #{tpu_custom_call.1} parent=1 // pred_check_branch
      %18 = sbr.rel (0) target = $region9
    $region8: #{tpu_custom_call.1} parent=1 // pred_region
      _
    $region9: #{tpu_custom_call.1} parent=1 // pred_fallthru
      _
    // Predicated region
    $region10: #{tpu_custom_call.1} parent=1 // pred_check
      _
    $region11: #{tpu_custom_call.1} parent=1 // pred_check_branch
      %20 = sbr.rel (0) target = $region13
    $region12: #{tpu_custom_call.1} parent=1 // pred_region
      _
    $region13: #{tpu_custom_call.1} parent=1 // pred_fallthru
      _
    // Predicated region
    $region14: #{tpu_custom_call.1} parent=1 // pred_check
      _
    $region15: #{tpu_custom_call.1} parent=1 // pred_check_branch
      %22 = sbr.rel (0) target = $region17
    $region16: #{tpu_custom_call.1} parent=1 // pred_region
      _
    $region17: #{tpu_custom_call.1} parent=1 // pred_fallthru
      _
    // Predicated region
    $region18: #{tpu_custom_call.1} parent=1 // pred_check
      _
    $region19: #{tpu_custom_call.1} parent=1 // pred_check_branch
      %24 = sbr.rel (0) target = $region21
    $region20: #{tpu_custom_call.1} parent=1 // pred_region
      _
    $region21: #{tpu_custom_call.1} parent=1 // pred_fallthru
      _
    // Predicated region
    $region22: #{tpu_custom_call.1} parent=1 // pred_check
      _
    $region23: #{tpu_custom_call.1} parent=1 // pred_check_branch
      %26 = sbr.rel (0) target = $region25
    $region24: #{tpu_custom_call.1} parent=1 // pred_region
      _
    $region25: #{tpu_custom_call.1} parent=1 // pred_fallthru
      _
    // Predicated region
    $region26: #{tpu_custom_call.1} parent=1 // pred_check
      _
    $region27: #{tpu_custom_call.1} parent=1 // pred_check_branch
      %28 = sbr.rel (0) target = $region29
    $region28: #{tpu_custom_call.1} parent=1 // pred_region
      _
    $region29: #{tpu_custom_call.1} parent=1 // pred_fallthru
      _
    // Predicated region
    $region30: #{tpu_custom_call.1} parent=1 // pred_check
      _
    $region31: #{tpu_custom_call.1} parent=1 // pred_check_branch
      %30 = sbr.rel (0) target = $region33
    $region32: #{tpu_custom_call.1} parent=1 // pred_region
      _
    $region33: #{tpu_custom_call.1} parent=1 // pred_fallthru
      _
    // Predicated region
    $region34: #{tpu_custom_call.1} parent=1 // pred_check
      _
    $region35: #{tpu_custom_call.1} parent=1 // pred_check_branch
      %32 = sbr.rel (0) target = $region37
    $region36: #{tpu_custom_call.1} parent=1 // pred_region
      _
    $region37: #{tpu_custom_call.1} parent=1 // pred_fallthru
      _
    %v33 = vld [vmem:[%s0] sm:$0xf]
    %v34 = vld [vmem:[%s0 + $0x4] sm:$0xf]
    %v35 = vld [vmem:[%s1] sm:$0xf]
    %v36 = vld [vmem:[%s1 + $0x4] sm:$0xf]
    %v37 = vld [vmem:[%s1 + $0x8] sm:$0xf]
    %v38 = vld [vmem:[%s1 + $0xc] sm:$0xf]
    %v39 = vld [vmem:[%s1 + $0x10] sm:$0xf]
    %v40 = vld [vmem:[%s1 + $0x14] sm:$0xf]
    %v41 = vld [vmem:[%s1 + $0x18] sm:$0xf]
    %v42 = vld [vmem:[%s1 + $0x1c] sm:$0xf]
    %v43 = vld [vmem:[%s1 + $0x20] sm:$0xf]
    %v44 = vld [vmem:[%s1 + $0x24] sm:$0xf]
    %v45 = vld [vmem:[%s1 + $0x28] sm:$0xf]
    %v46 = vld [vmem:[%s1 + $0x2c] sm:$0xf]
    %v47 = vld [vmem:[%s1 + $0x30] sm:$0xf]
    %v48 = vld [vmem:[%s1 + $0x34] sm:$0xf]
    %v49 = vld [vmem:[%s1 + $0x38] sm:$0xf]
    %v50 = vld [vmem:[%s1 + $0x3c] sm:$0xf]
    %v51 = vld [vmem:[%s2] sm:$0x1]
    %v53 = vperm.slane %v51, 0
    %v57 = vunpack.c.l.b16 %v33
    %v58 = vunpack.c.l.b16 %v34
    %v59 = vpack.c.b16 %v58, %v57
    %v77 = vunpack.c.l.b16 %v35
    %v78 = vunpack.c.l.b16 %v36
    %v79 = vunpack.c.l.b16 %v37
    %v80 = vunpack.c.l.b16 %v38
    %v81 = vunpack.c.l.b16 %v39
    %v82 = vunpack.c.l.b16 %v40
    %v83 = vunpack.c.l.b16 %v41
    %v84 = vunpack.c.l.b16 %v42
    %v85 = vunpack.c.l.b16 %v43
    %v86 = vunpack.c.l.b16 %v44
    %v87 = vunpack.c.l.b16 %v45
    %v88 = vunpack.c.l.b16 %v46
    %v89 = vunpack.c.l.b16 %v47
    %v90 = vunpack.c.l.b16 %v48
    %v91 = vunpack.c.l.b16 %v49
    %v92 = vunpack.c.l.b16 %v50
    %v93 = vpack.c.b16 %v78, %v77
    %v94 = vpack.c.b16 %v80, %v79
    %v95 = vpack.c.b16 %v82, %v81
    %v96 = vpack.c.b16 %v84, %v83
    %v97 = vpack.c.b16 %v86, %v85
    %v98 = vpack.c.b16 %v88, %v87
    %v99 = vpack.c.b16 %v90, %v89
    %v100 = vpack.c.b16 %v92, %v91
    %109 = vmatpush.bf16.msra.mxu0 %v100
    %110 = vmatpush.bf16.msra.mxu0 %v99
    %111 = vmatpush.bf16.msra.mxu0 %v98
    %112 = vmatpush.bf16.msra.mxu0 %v97
    %113 = vmatpush.bf16.msra.mxu0 %v96
    %114 = vmatpush.bf16.msra.mxu0 %v95
    %115 = vmatpush.bf16.msra.mxu0 %v94
    %116 = vmatpush.bf16.msra.mxu0 %v93
    %117 = vmatmul.bf16.gmra.mxu0 %v59
    %v118 = vpop.f32.mrf.mxu0
    %v119 = vadd.f32 %v53, %v118
    %v120 = vpop.f32.mrf.mxu0
    %v121 = vadd.f32 %v53, %v120
    %122 = vdwg.mxu0
    %v123 = vmax.f32 %v119, 0.0
    %v124 = vmax.f32 %v121, 0.0
    %v125 = vpack.c.bf16 %v124, %v123
    %v126 = vld [vmem:[%s3] sm:$0xf]
    %v127 = vld [vmem:[%s3 + $0x4] sm:$0xf]
    %v128 = vld [vmem:[%s3 + $0x8] sm:$0xf]
    %v129 = vld [vmem:[%s3 + $0xc] sm:$0xf]
    %v130 = vld [vmem:[%s3 + $0x10] sm:$0xf]
    %v131 = vld [vmem:[%s3 + $0x14] sm:$0xf]
    %v132 = vld [vmem:[%s3 + $0x18] sm:$0xf]
    %v133 = vld [vmem:[%s3 + $0x1c] sm:$0xf]
    %v134 = vld [vmem:[%s3 + $0x20] sm:$0xf]
    %v135 = vld [vmem:[%s3 + $0x24] sm:$0xf]
    %v136 = vld [vmem:[%s3 + $0x28] sm:$0xf]
    %v137 = vld [vmem:[%s3 + $0x2c] sm:$0xf]
    %v138 = vld [vmem:[%s3 + $0x30] sm:$0xf]
    %v139 = vld [vmem:[%s3 + $0x34] sm:$0xf]
    %v140 = vld [vmem:[%s3 + $0x38] sm:$0xf]
    %v141 = vld [vmem:[%s3 + $0x3c] sm:$0xf]
    %v142 = vld [vmem:[%s4] sm:$0x1]
    %v144 = vperm.slane %v142, 0
    %v162 = vunpack.c.l.b16 %v126
    %v163 = vunpack.c.l.b16 %v127
    %v164 = vunpack.c.l.b16 %v128
    %v165 = vunpack.c.l.b16 %v129
    %v166 = vunpack.c.l.b16 %v130
    %v167 = vunpack.c.l.b16 %v131
    %v168 = vunpack.c.l.b16 %v132
    %v169 = vunpack.c.l.b16 %v133
    %v170 = vunpack.c.l.b16 %v134
    %v171 = vunpack.c.l.b16 %v135
    %v172 = vunpack.c.l.b16 %v136
    %v173 = vunpack.c.l.b16 %v137
    %v174 = vunpack.c.l.b16 %v138
    %v175 = vunpack.c.l.b16 %v139
    %v176 = vunpack.c.l.b16 %v140
    %v177 = vunpack.c.l.b16 %v141
    %v178 = vpack.c.b16 %v163, %v162
    %v179 = vpack.c.b16 %v165, %v164
    %v180 = vpack.c.b16 %v167, %v166
    %v181 = vpack.c.b16 %v169, %v168
    %v182 = vpack.c.b16 %v171, %v170
    %v183 = vpack.c.b16 %v173, %v172
    %v184 = vpack.c.b16 %v175, %v174
    %v185 = vpack.c.b16 %v177, %v176
    %194 = vmatpush.bf16.msra.mxu0 %v185
    %195 = vmatpush.bf16.msra.mxu0 %v184
    %196 = vmatpush.bf16.msra.mxu0 %v183
    %197 = vmatpush.bf16.msra.mxu0 %v182
    %198 = vmatpush.bf16.msra.mxu0 %v181
    %199 = vmatpush.bf16.msra.mxu0 %v180
    %200 = vmatpush.bf16.msra.mxu0 %v179
    %201 = vmatpush.bf16.msra.mxu0 %v178
    %202 = vmatmul.bf16.gmra.mxu0 %v125
    %v203 = vpop.f32.mrf.mxu0
    %v204 = vadd.f32 %v144, %v203
    %v205 = vpop.f32.mrf.mxu0
    %v206 = vadd.f32 %v144, %v205
    %207 = vdwg.mxu0
    %v208 = vmax.f32 %v204, 0.0
    %v209 = vmax.f32 %v206, 0.0
    %v210 = vpack.c.bf16 %v209, %v208
    %v211 = vld [vmem:[%s5] sm:$0xf]
    %v212 = vld [vmem:[%s5 + $0x4] sm:$0xf]
    %v213 = vld [vmem:[%s5 + $0x8] sm:$0xf]
    %v214 = vld [vmem:[%s5 + $0xc] sm:$0xf]
    %v215 = vld [vmem:[%s5 + $0x10] sm:$0xf]
    %v216 = vld [vmem:[%s5 + $0x14] sm:$0xf]
    %v217 = vld [vmem:[%s5 + $0x18] sm:$0xf]
    %v218 = vld [vmem:[%s5 + $0x1c] sm:$0xf]
    %v219 = vld [vmem:[%s5 + $0x20] sm:$0xf]
    %v220 = vld [vmem:[%s5 + $0x24] sm:$0xf]
    %v221 = vld [vmem:[%s5 + $0x28] sm:$0xf]
    %v222 = vld [vmem:[%s5 + $0x2c] sm:$0xf]
    %v223 = vld [vmem:[%s5 + $0x30] sm:$0xf]
    %v224 = vld [vmem:[%s5 + $0x34] sm:$0xf]
    %v225 = vld [vmem:[%s5 + $0x38] sm:$0xf]
    %v226 = vld [vmem:[%s5 + $0x3c] sm:$0xf]
    %v227 = vld [vmem:[%s6] sm:$0x1]
    %v229 = vperm.slane %v227, 0
    %v247 = vunpack.c.l.b16 %v211
    %v248 = vunpack.c.l.b16 %v212
    %v249 = vunpack.c.l.b16 %v213
    %v250 = vunpack.c.l.b16 %v214
    %v251 = vunpack.c.l.b16 %v215
    %v252 = vunpack.c.l.b16 %v216
    %v253 = vunpack.c.l.b16 %v217
    %v254 = vunpack.c.l.b16 %v218
    %v255 = vunpack.c.l.b16 %v219
    %v256 = vunpack.c.l.b16 %v220
    %v257 = vunpack.c.l.b16 %v221
    %v258 = vunpack.c.l.b16 %v222
    %v259 = vunpack.c.l.b16 %v223
    %v260 = vunpack.c.l.b16 %v224
    %v261 = vunpack.c.l.b16 %v225
    %v262 = vunpack.c.l.b16 %v226
    %v263 = vpack.c.b16 %v248, %v247
    %v264 = vpack.c.b16 %v250, %v249
    %v265 = vpack.c.b16 %v252, %v251
    %v266 = vpack.c.b16 %v254, %v253
    %v267 = vpack.c.b16 %v256, %v255
    %v268 = vpack.c.b16 %v258, %v257
    %v269 = vpack.c.b16 %v260, %v259
    %v270 = vpack.c.b16 %v262, %v261
    %279 = vmatpush.bf16.msra.mxu0 %v270
    %280 = vmatpush.bf16.msra.mxu0 %v269
    %281 = vmatpush.bf16.msra.mxu0 %v268
    %282 = vmatpush.bf16.msra.mxu0 %v267
    %283 = vmatpush.bf16.msra.mxu0 %v266
    %284 = vmatpush.bf16.msra.mxu0 %v265
    %285 = vmatpush.bf16.msra.mxu0 %v264
    %286 = vmatpush.bf16.msra.mxu0 %v263
    %287 = vmatmul.bf16.gmra.mxu0 %v210
    %v288 = vpop.f32.mrf.mxu0
    %v289 = vadd.f32 %v229, %v288
    %v290 = vpop.f32.mrf.mxu0
    %v291 = vadd.f32 %v229, %v290
    %292 = vdwg.mxu0
    %v293 = vmax.f32 %v289, 0.0
    %v294 = vmax.f32 %v291, 0.0
    %v295 = vpack.c.bf16 %v294, %v293
    %v296 = vld [vmem:[%s7] sm:$0xff]
    %v297 = vld [vmem:[%s7 + $0x8] sm:$0xff]
    %v298 = vld [vmem:[%s7 + $0x10] sm:$0xff]
    %v299 = vld [vmem:[%s7 + $0x18] sm:$0xf]
    %v300 = vld [vmem:[%s7 + $0x1c] sm:$0xff]
    %v301 = vld [vmem:[%s7 + $0x24] sm:$0xff]
    %v302 = vld [vmem:[%s7 + $0x2c] sm:$0xff]
    %v303 = vld [vmem:[%s7 + $0x34] sm:$0xf]
    %v304 = vld [vmem:[%s7 + $0x38] sm:$0xff]
    %v305 = vld [vmem:[%s7 + $0x40] sm:$0xff]
    %v306 = vld [vmem:[%s7 + $0x48] sm:$0xff]
    %v307 = vld [vmem:[%s7 + $0x50] sm:$0xf]
    %v308 = vld [vmem:[%s7 + $0x54] sm:$0xff]
    %v309 = vld [vmem:[%s7 + $0x5c] sm:$0xff]
    %v310 = vld [vmem:[%s7 + $0x64] sm:$0xff]
    %v311 = vld [vmem:[%s7 + $0x6c] sm:$0xf]
    %v312 = vld [vmem:[%s7 + $0x70] sm:$0xff]
    %v313 = vld [vmem:[%s7 + $0x78] sm:$0xff]
    %v314 = vld [vmem:[%s7 + $0x80] sm:$0xff]
    %v315 = vld [vmem:[%s7 + $0x88] sm:$0xf]
    %v316 = vld [vmem:[%s7 + $0x8c] sm:$0xff]
    %v317 = vld [vmem:[%s7 + $0x94] sm:$0xff]
    %v318 = vld [vmem:[%s7 + $0x9c] sm:$0xff]
    %v319 = vld [vmem:[%s7 + $0xa4] sm:$0xf]
    %v320 = vld [vmem:[%s7 + $0xa8] sm:$0xff]
    %v321 = vld [vmem:[%s7 + $0xb0] sm:$0xff]
    %v322 = vld [vmem:[%s7 + $0xb8] sm:$0xff]
    %v323 = vld [vmem:[%s7 + $0xc0] sm:$0xf]
    %v324 = vld [vmem:[%s7 + $0xc4] sm:$0xff]
    %v325 = vld [vmem:[%s7 + $0xcc] sm:$0xff]
    %v326 = vld [vmem:[%s7 + $0xd4] sm:$0xff]
    %v327 = vld [vmem:[%s7 + $0xdc] sm:$0xf]
    %v328 = vld [vmem:[%s7 + $0xe0] sm:$0xff]
    %v329 = vld [vmem:[%s7 + $0xe8] sm:$0xff]
    %v330 = vld [vmem:[%s7 + $0xf0] sm:$0xff]
    %v331 = vld [vmem:[%s7 + $0xf8] sm:$0xf]
    %v332 = vld [vmem:[%s7 + $0xfc] sm:$0xff]
    %v333 = vld [vmem:[%s7 + $0x104] sm:$0xff]
    %v334 = vld [vmem:[%s7 + $0x10c] sm:$0xff]
    %v335 = vld [vmem:[%s7 + $0x114] sm:$0xf]
    %v336 = vld [vmem:[%s7 + $0x118] sm:$0xff]
    %v337 = vld [vmem:[%s7 + $0x120] sm:$0xff]
    %v338 = vld [vmem:[%s7 + $0x128] sm:$0xff]
    %v339 = vld [vmem:[%s7 + $0x130] sm:$0xf]
    %v340 = vld [vmem:[%s7 + $0x134] sm:$0xff]
    %v341 = vld [vmem:[%s7 + $0x13c] sm:$0xff]
    %v342 = vld [vmem:[%s7 + $0x144] sm:$0xff]
    %v343 = vld [vmem:[%s7 + $0x14c] sm:$0xf]
    %v344 = vld [vmem:[%s7 + $0x150] sm:$0xff]
    %v345 = vld [vmem:[%s7 + $0x158] sm:$0xff]
    %v346 = vld [vmem:[%s7 + $0x160] sm:$0xff]
    %v347 = vld [vmem:[%s7 + $0x168] sm:$0xf]
    %v348 = vld [vmem:[%s7 + $0x16c] sm:$0xff]
    %v349 = vld [vmem:[%s7 + $0x174] sm:$0xff]
    %v350 = vld [vmem:[%s7 + $0x17c] sm:$0xff]
    %v351 = vld [vmem:[%s7 + $0x184] sm:$0xf]
    %v352 = vld [vmem:[%s7 + $0x188] sm:$0xff]
    %v353 = vld [vmem:[%s7 + $0x190] sm:$0xff]
    %v354 = vld [vmem:[%s7 + $0x198] sm:$0xff]
    %v355 = vld [vmem:[%s7 + $0x1a0] sm:$0xf]
    %v356 = vld [vmem:[%s7 + $0x1a4] sm:$0xff]
    %v357 = vld [vmem:[%s7 + $0x1ac] sm:$0xff]
    %v358 = vld [vmem:[%s7 + $0x1b4] sm:$0xff]
    %v359 = vld [vmem:[%s7 + $0x1bc] sm:$0xf]
    %v360 = vld [vmem:[%s8] sm:$0x7f]
    %v362 = vperm.slane %v360, 0
    %v363 = vperm.slane %v360, 1
    %v364 = vperm.slane %v360, 2
    %v365 = vperm.slane %v360, 3
    %v366 = vperm.slane %v360, 4
    %v367 = vperm.slane %v360, 5
    %v368 = vperm.slane %v360, 6
    %v440 = vunpack.c.l.b16 %v296
    %v441 = vunpack.c.h.b16 %v296
    %v442 = vunpack.c.l.b16 %v297
    %v443 = vunpack.c.h.b16 %v297
    %v444 = vunpack.c.l.b16 %v298
    %v445 = vunpack.c.h.b16 %v298
    %v446 = vunpack.c.l.b16 %v299
    %v447 = vunpack.c.l.b16 %v300
    %v448 = vunpack.c.h.b16 %v300
    %v449 = vunpack.c.l.b16 %v301
    %v450 = vunpack.c.h.b16 %v301
    %v451 = vunpack.c.l.b16 %v302
    %v452 = vunpack.c.h.b16 %v302
    %v453 = vunpack.c.l.b16 %v303
    %v454 = vunpack.c.l.b16 %v304
    %v455 = vunpack.c.h.b16 %v304
    %v456 = vunpack.c.l.b16 %v305
    %v457 = vunpack.c.h.b16 %v305
    %v458 = vunpack.c.l.b16 %v306
    %v459 = vunpack.c.h.b16 %v306
    %v460 = vunpack.c.l.b16 %v307
    %v461 = vunpack.c.l.b16 %v308
    %v462 = vunpack.c.h.b16 %v308
    %v463 = vunpack.c.l.b16 %v309
    %v464 = vunpack.c.h.b16 %v309
    %v465 = vunpack.c.l.b16 %v310
    %v466 = vunpack.c.h.b16 %v310
    %v467 = vunpack.c.l.b16 %v311
    %v468 = vunpack.c.l.b16 %v312
    %v469 = vunpack.c.h.b16 %v312
    %v470 = vunpack.c.l.b16 %v313
    %v471 = vunpack.c.h.b16 %v313
    %v472 = vunpack.c.l.b16 %v314
    %v473 = vunpack.c.h.b16 %v314
    %v474 = vunpack.c.l.b16 %v315
    %v475 = vunpack.c.l.b16 %v316
    %v476 = vunpack.c.h.b16 %v316
    %v477 = vunpack.c.l.b16 %v317
    %v478 = vunpack.c.h.b16 %v317
    %v479 = vunpack.c.l.b16 %v318
    %v480 = vunpack.c.h.b16 %v318
    %v481 = vunpack.c.l.b16 %v319
    %v482 = vunpack.c.l.b16 %v320
    %v483 = vunpack.c.h.b16 %v320
    %v484 = vunpack.c.l.b16 %v321
    %v485 = vunpack.c.h.b16 %v321
    %v486 = vunpack.c.l.b16 %v322
    %v487 = vunpack.c.h.b16 %v322
    %v488 = vunpack.c.l.b16 %v323
    %v489 = vunpack.c.l.b16 %v324
    %v490 = vunpack.c.h.b16 %v324
    %v491 = vunpack.c.l.b16 %v325
    %v492 = vunpack.c.h.b16 %v325
    %v493 = vunpack.c.l.b16 %v326
    %v494 = vunpack.c.h.b16 %v326
    %v495 = vunpack.c.l.b16 %v327
    %v496 = vunpack.c.l.b16 %v328
    %v497 = vunpack.c.h.b16 %v328
    %v498 = vunpack.c.l.b16 %v329
    %v499 = vunpack.c.h.b16 %v329
    %v500 = vunpack.c.l.b16 %v330
    %v501 = vunpack.c.h.b16 %v330
    %v502 = vunpack.c.l.b16 %v331
    %v503 = vunpack.c.l.b16 %v332
    %v504 = vunpack.c.h.b16 %v332
    %v505 = vunpack.c.l.b16 %v333
    %v506 = vunpack.c.h.b16 %v333
    %v507 = vunpack.c.l.b16 %v334
    %v508 = vunpack.c.h.b16 %v334
    %v509 = vunpack.c.l.b16 %v335
    %v510 = vunpack.c.l.b16 %v336
    %v511 = vunpack.c.h.b16 %v336
    %v512 = vunpack.c.l.b16 %v337
    %v513 = vunpack.c.h.b16 %v337
    %v514 = vunpack.c.l.b16 %v338
    %v515 = vunpack.c.h.b16 %v338
    %v516 = vunpack.c.l.b16 %v339
    %v517 = vunpack.c.l.b16 %v340
    %v518 = vunpack.c.h.b16 %v340
    %v519 = vunpack.c.l.b16 %v341
    %v520 = vunpack.c.h.b16 %v341
    %v521 = vunpack.c.l.b16 %v342
    %v522 = vunpack.c.h.b16 %v342
    %v523 = vunpack.c.l.b16 %v343
    %v524 = vunpack.c.l.b16 %v344
    %v525 = vunpack.c.h.b16 %v344
    %v526 = vunpack.c.l.b16 %v345
    %v527 = vunpack.c.h.b16 %v345
    %v528 = vunpack.c.l.b16 %v346
    %v529 = vunpack.c.h.b16 %v346
    %v530 = vunpack.c.l.b16 %v347
    %v531 = vunpack.c.l.b16 %v348
    %v532 = vunpack.c.h.b16 %v348
    %v533 = vunpack.c.l.b16 %v349
    %v534 = vunpack.c.h.b16 %v349
    %v535 = vunpack.c.l.b16 %v350
    %v536 = vunpack.c.h.b16 %v350
    %v537 = vunpack.c.l.b16 %v351
    %v538 = vunpack.c.l.b16 %v352
    %v539 = vunpack.c.h.b16 %v352
    %v540 = vunpack.c.l.b16 %v353
    %v541 = vunpack.c.h.b16 %v353
    %v542 = vunpack.c.l.b16 %v354
    %v543 = vunpack.c.h.b16 %v354
    %v544 = vunpack.c.l.b16 %v355
    %v545 = vunpack.c.l.b16 %v356
    %v546 = vunpack.c.h.b16 %v356
    %v547 = vunpack.c.l.b16 %v357
    %v548 = vunpack.c.h.b16 %v357
    %v549 = vunpack.c.l.b16 %v358
    %v550 = vunpack.c.h.b16 %v358
    %v551 = vunpack.c.l.b16 %v359
    %v552 = vpack.c.b16 %v447, %v440
    %v553 = vpack.c.b16 %v448, %v441
    %v554 = vpack.c.b16 %v449, %v442
    %v555 = vpack.c.b16 %v450, %v443
    %v556 = vpack.c.b16 %v451, %v444
    %v557 = vpack.c.b16 %v452, %v445
    %v558 = vpack.c.b16 %v453, %v446
    %v559 = vpack.c.b16 %v461, %v454
    %v560 = vpack.c.b16 %v462, %v455
    %v561 = vpack.c.b16 %v463, %v456
    %v562 = vpack.c.b16 %v464, %v457
    %v563 = vpack.c.b16 %v465, %v458
    %v564 = vpack.c.b16 %v466, %v459
    %v565 = vpack.c.b16 %v467, %v460
    %v566 = vpack.c.b16 %v475, %v468
    %v567 = vpack.c.b16 %v476, %v469
    %v568 = vpack.c.b16 %v477, %v470
    %v569 = vpack.c.b16 %v478, %v471
    %v570 = vpack.c.b16 %v479, %v472
    %v571 = vpack.c.b16 %v480, %v473
    %v572 = vpack.c.b16 %v481, %v474
    %v573 = vpack.c.b16 %v489, %v482
    %v574 = vpack.c.b16 %v490, %v483
    %v575 = vpack.c.b16 %v491, %v484
    %v576 = vpack.c.b16 %v492, %v485
    %v577 = vpack.c.b16 %v493, %v486
    %v578 = vpack.c.b16 %v494, %v487
    %v579 = vpack.c.b16 %v495, %v488
    %v580 = vpack.c.b16 %v503, %v496
    %v581 = vpack.c.b16 %v504, %v497
    %v582 = vpack.c.b16 %v505, %v498
    %v583 = vpack.c.b16 %v506, %v499
    %v584 = vpack.c.b16 %v507, %v500
    %v585 = vpack.c.b16 %v508, %v501
    %v586 = vpack.c.b16 %v509, %v502
    %v587 = vpack.c.b16 %v517, %v510
    %v588 = vpack.c.b16 %v518, %v511
    %v589 = vpack.c.b16 %v519, %v512
    %v590 = vpack.c.b16 %v520, %v513
    %v591 = vpack.c.b16 %v521, %v514
    %v592 = vpack.c.b16 %v522, %v515
    %v593 = vpack.c.b16 %v523, %v516
    %v594 = vpack.c.b16 %v531, %v524
    %v595 = vpack.c.b16 %v532, %v525
    %v596 = vpack.c.b16 %v533, %v526
    %v597 = vpack.c.b16 %v534, %v527
    %v598 = vpack.c.b16 %v535, %v528
    %v599 = vpack.c.b16 %v536, %v529
    %v600 = vpack.c.b16 %v537, %v530
    %v601 = vpack.c.b16 %v545, %v538
    %v602 = vpack.c.b16 %v546, %v539
    %v603 = vpack.c.b16 %v547, %v540
    %v604 = vpack.c.b16 %v548, %v541
    %v605 = vpack.c.b16 %v549, %v542
    %v606 = vpack.c.b16 %v550, %v543
    %v607 = vpack.c.b16 %v551, %v544
    %664 = vmatpush.bf16.msra.mxu0 %v601
    %665 = vmatpush.bf16.msra.mxu0 %v594
    %666 = vmatpush.bf16.msra.mxu0 %v587
    %667 = vmatpush.bf16.msra.mxu0 %v580
    %668 = vmatpush.bf16.msra.mxu0 %v573
    %669 = vmatpush.bf16.msra.mxu0 %v566
    %670 = vmatpush.bf16.msra.mxu0 %v559
    %671 = vmatpush.bf16.msra.mxu0 %v552
    %672 = vmatmul.bf16.gmra.mxu0 %v295
    %v673 = vpop.f32.mrf.mxu0
    %v674 = vadd.f32 %v362, %v673
    %v675 = vpop.f32.mrf.mxu0
    %v676 = vadd.f32 %v362, %v675
    %677 = vdwg.mxu0
    %678 = vmatpush.bf16.msra.mxu0 %v602
    %679 = vmatpush.bf16.msra.mxu0 %v595
    %680 = vmatpush.bf16.msra.mxu0 %v588
    %681 = vmatpush.bf16.msra.mxu0 %v581
    %682 = vmatpush.bf16.msra.mxu0 %v574
    %683 = vmatpush.bf16.msra.mxu0 %v567
    %684 = vmatpush.bf16.msra.mxu0 %v560
    %685 = vmatpush.bf16.msra.mxu0 %v553
    %686 = vmatmul.bf16.gmra.mxu0 %v295
    %v687 = vpop.f32.mrf.mxu0
    %v688 = vadd.f32 %v363, %v687
    %v689 = vpop.f32.mrf.mxu0
    %v690 = vadd.f32 %v363, %v689
    %691 = vdwg.mxu0
    %692 = vmatpush.bf16.msra.mxu0 %v603
    %693 = vmatpush.bf16.msra.mxu0 %v596
    %694 = vmatpush.bf16.msra.mxu0 %v589
    %695 = vmatpush.bf16.msra.mxu0 %v582
    %696 = vmatpush.bf16.msra.mxu0 %v575
    %697 = vmatpush.bf16.msra.mxu0 %v568
    %698 = vmatpush.bf16.msra.mxu0 %v561
    %699 = vmatpush.bf16.msra.mxu0 %v554
    %700 = vmatmul.bf16.gmra.mxu0 %v295
    %v701 = vpop.f32.mrf.mxu0
    %v702 = vadd.f32 %v364, %v701
    %v703 = vpop.f32.mrf.mxu0
    %v704 = vadd.f32 %v364, %v703
    %705 = vdwg.mxu0
    %706 = vmatpush.bf16.msra.mxu0 %v604
    %707 = vmatpush.bf16.msra.mxu0 %v597
    %708 = vmatpush.bf16.msra.mxu0 %v590
    %709 = vmatpush.bf16.msra.mxu0 %v583
    %710 = vmatpush.bf16.msra.mxu0 %v576
    %711 = vmatpush.bf16.msra.mxu0 %v569
    %712 = vmatpush.bf16.msra.mxu0 %v562
    %713 = vmatpush.bf16.msra.mxu0 %v555
    %714 = vmatmul.bf16.gmra.mxu0 %v295
    %v715 = vpop.f32.mrf.mxu0
    %v716 = vadd.f32 %v365, %v715
    %v717 = vpop.f32.mrf.mxu0
    %v718 = vadd.f32 %v365, %v717
    %719 = vdwg.mxu0
    %720 = vmatpush.bf16.msra.mxu0 %v605
    %721 = vmatpush.bf16.msra.mxu0 %v598
    %722 = vmatpush.bf16.msra.mxu0 %v591
    %723 = vmatpush.bf16.msra.mxu0 %v584
    %724 = vmatpush.bf16.msra.mxu0 %v577
    %725 = vmatpush.bf16.msra.mxu0 %v570
    %726 = vmatpush.bf16.msra.mxu0 %v563
    %727 = vmatpush.bf16.msra.mxu0 %v556
    %728 = vmatmul.bf16.gmra.mxu0 %v295
    %v729 = vpop.f32.mrf.mxu0
    %v730 = vadd.f32 %v366, %v729
    %v731 = vpop.f32.mrf.mxu0
    %v732 = vadd.f32 %v366, %v731
    %733 = vdwg.mxu0
    %734 = vmatpush.bf16.msra.mxu0 %v606
    %735 = vmatpush.bf16.msra.mxu0 %v599
    %736 = vmatpush.bf16.msra.mxu0 %v592
    %737 = vmatpush.bf16.msra.mxu0 %v585
    %738 = vmatpush.bf16.msra.mxu0 %v578
    %739 = vmatpush.bf16.msra.mxu0 %v571
    %740 = vmatpush.bf16.msra.mxu0 %v564
    %741 = vmatpush.bf16.msra.mxu0 %v557
    %742 = vmatmul.bf16.gmra.mxu0 %v295
    %v743 = vpop.f32.mrf.mxu0
    %v744 = vadd.f32 %v367, %v743
    %v745 = vpop.f32.mrf.mxu0
    %v746 = vadd.f32 %v367, %v745
    %747 = vdwg.mxu0
    %748 = vmatpush.bf16.msra.mxu0 %v607
    %749 = vmatpush.bf16.msra.mxu0 %v600
    %750 = vmatpush.bf16.msra.mxu0 %v593
    %751 = vmatpush.bf16.msra.mxu0 %v586
    %752 = vmatpush.bf16.msra.mxu0 %v579
    %753 = vmatpush.bf16.msra.mxu0 %v572
    %754 = vmatpush.bf16.msra.mxu0 %v565
    %755 = vmatpush.bf16.msra.mxu0 %v558
    %756 = vmatmul.bf16.gmra.mxu0 %v295
    %v757 = vpop.f32.mrf.mxu0
    %v758 = vadd.f32 %v368, %v757
    %v759 = vpop.f32.mrf.mxu0
    %v760 = vadd.f32 %v368, %v759
    %761 = vdwg.mxu0
    %v762 = vpack.c.bf16 %v688, %v674
    %v763 = vpack.c.bf16 %v716, %v702
    %v764 = vpack.c.bf16 %v744, %v730
    %v765 = vpack.c.bf16 %v758, %v758
    %v766 = vpack.c.bf16 %v690, %v676
    %v767 = vpack.c.bf16 %v718, %v704
    %v768 = vpack.c.bf16 %v746, %v732
    %v769 = vpack.c.bf16 %v760, %v760
    %v770 = vunpack.c.l.bf16 %v762
    %v771 = vunpack.c.h.bf16 %v762
    %v772 = vunpack.c.l.bf16 %v763
    %v773 = vunpack.c.h.bf16 %v763
    %v774 = vunpack.c.l.bf16 %v764
    %v775 = vunpack.c.h.bf16 %v764
    %v776 = vunpack.c.l.bf16 %v765
    %v777 = vunpack.c.l.bf16 %v766
    %v778 = vunpack.c.h.bf16 %v766
    %v779 = vunpack.c.l.bf16 %v767
    %v780 = vunpack.c.h.bf16 %v767
    %v781 = vunpack.c.l.bf16 %v768
    %v782 = vunpack.c.h.bf16 %v768
    %v783 = vunpack.c.l.bf16 %v769
    %v784 = vtanh.pop %v770
    %v785 = vtanh.pop %v771
    %v786 = vtanh.pop %v772
    %v787 = vtanh.pop %v773
    %v788 = vtanh.pop %v774
    %v789 = vtanh.pop %v775
    %v790 = vtanh.pop %v776
    %v791 = vtanh.pop %v777
    %v792 = vtanh.pop %v778
    %v793 = vtanh.pop %v779
    %v794 = vtanh.pop %v780
    %v795 = vtanh.pop %v781
    %v796 = vtanh.pop %v782
    %v797 = vtanh.pop %v783
    %v798 = vpack.c.bf16 %v785, %v784
    %v799 = vpack.c.bf16 %v787, %v786
    %v800 = vpack.c.bf16 %v789, %v788
    %v801 = vpack.c.bf16 %v790, %v790
    %v802 = vpack.c.bf16 %v792, %v791
    %v803 = vpack.c.bf16 %v794, %v793
    %v804 = vpack.c.bf16 %v796, %v795
    %v805 = vpack.c.bf16 %v797, %v797
    %806 = vst [vmem:[#allocation2] sm:$0xff] %v798
    %807 = vst [vmem:[#allocation2 + $0x8] sm:$0xff] %v799
    %808 = vst [vmem:[#allocation2 + $0x10] sm:$0xff] %v800
    %vm809 = vcmask 125952
    %810 = vst.msk [vmem:[#allocation2 + $0x18] sm:$0xf] %vm809, %v801
    %811 = vst [vmem:[#allocation2 + $0x1c] sm:$0xff] %v802
    %812 = vst [vmem:[#allocation2 + $0x24] sm:$0xff] %v803
    %813 = vst [vmem:[#allocation2 + $0x2c] sm:$0xff] %v804
    %814 = vst.msk [vmem:[#allocation2 + $0x34] sm:$0xf] %vm809, %v805
    // Predicated region
    $region38: #{tpu_custom_call.1} parent=1 // pred_check
      _
    $region39: #{tpu_custom_call.1} parent=1 // pred_check_branch
      %816 = sbr.rel (0) target = $region41
    $region40: #{tpu_custom_call.1} parent=1 // pred_region
      %818 = vsyncadd [#allocation3], 0
      %s819 = sshll.u32 [#allocation2], 4
      %s820 = int_to_ptr.vmem [resolvable:$true] %s819
      %s821 = sshll.u32 %s9, 4
      %s822 = int_to_ptr.hbm [resolvable:$true] %s821
      %827 = dma.vmem_to_hbm [thread:$0]  %s820, 896, %s822, [#allocation3], 448, 448, 28
    $region41: #{tpu_custom_call.1} parent=1 // pred_fallthru
      _
    // Predicated region
    $region42: #{tpu_custom_call.1} parent=1 // pred_check
      _
    $region43: #{tpu_custom_call.1} parent=1 // pred_check_branch
      %829 = sbr.rel (0) target = $region45
    $region44: #{tpu_custom_call.1} parent=1 // pred_region
      %831 = dma.done [#allocation3], 896
    $region45: #{tpu_custom_call.1} parent=1 // pred_fallthru
      _
    %832 = vsyncpa [#allocation3], 1

</llo_original>
